<compile_context>
chip_gen: v6e
topology: v6e:2x2x1
jax: 0.10.0
libtpu: 0.0.40
codegen_flags: <defaults>
</compile_context>

<pallas_src>
import jax
import jax.numpy as jnp
from jax.experimental import pallas as pl
from jax.experimental.pallas import tpu as pltpu


def _linear_t_kernel(w_ref, b_ref, xt_ref, ot_ref):
    """out^T tile = W @ x^T tile + b  (batch on lanes -> dense loads/stores).

    w_ref : (N, K) VMEM, resident across grid steps
    b_ref : (N, 1) VMEM, resident across grid steps
    xt_ref: (K, tb) VMEM, streamed
    ot_ref: (N, tb) VMEM, streamed
    """
    acc = jnp.dot(w_ref[...], xt_ref[...], preferred_element_type=jnp.float32)
    ot_ref[...] = (acc + b_ref[...]).astype(ot_ref.dtype)


def _choose_batch_tile(batch, tb_max):
    """Lane-dense batch tile: multiple of 128, <= batch, even grid if possible."""
    tb = max(128, (min(tb_max, batch) // 128) * 128)
    grid = -(-batch // tb)
    if grid > 1 and grid % 2 == 1:
        # Even grid length -> both v7x TensorCores get the same number of tiles.
        grid2 = grid + 1
        tb2 = max(128, ((-(-batch // grid2)) + 127) // 128 * 128)
        if (-(-batch // tb2)) % 2 == 0:
            tb = tb2
    return tb


def statistics_module_forward(x, w, b, *, tb=32768, xla_batch_threshold=1024):
    """Forward pass of StatisticsModule.

    x: (B, in_features) float32  (content_stat_vec)
    w: (out_features, in_features) float32  (torch nn.Linear weight layout)
    b: (out_features,) float32
    returns logits: (B, out_features) float32
    """
    B, K = x.shape
    N, K2 = w.shape
    assert K == K2 and b.shape == (N,)

    # Tiny batches: let XLA fuse the GEMV; a Pallas dispatch cannot be amortized.
    if B < max(xla_batch_threshold, 128):
        return x @ w.T + b[None, :]

    tb_eff = _choose_batch_tile(B, tb)
    grid = (pl.cdiv(B, tb_eff),)

    # Lane-dense (batch-on-lanes) operands. These transposes are layout
    # plumbing; drop them if the producer/consumer use the transposed layout.
    xt = x.T                      # (K, B)
    b2 = b.reshape(N, 1)          # broadcast along lanes inside the kernel

    itemsize = jnp.dtype(x.dtype).itemsize
    cost = pl.CostEstimate(
        flops=2 * B * K * N,
        transcendentals=0,
        bytes_accessed=(x.size + w.size + b.size) * itemsize + B * N * 4,
    )

    out_t = pl.pallas_call(
        _linear_t_kernel,
        out_shape=jax.ShapeDtypeStruct((N, B), jnp.float32),
        grid=grid,
        in_specs=[
            pl.BlockSpec((N, K), lambda i: (0, 0)),        # W: VMEM-resident
            pl.BlockSpec((N, 1), lambda i: (0, 0)),        # b: VMEM-resident
            pl.BlockSpec((K, tb_eff), lambda i: (0, i)),   # x^T: streamed
        ],
        out_specs=pl.BlockSpec((N, tb_eff), lambda i: (0, i)),
        compiler_params=pltpu.CompilerParams(
            dimension_semantics=("parallel",),             # split batch across TCs (v7x)
            vmem_limit_bytes=32 * 1024 * 1024,             # explicit: v5e default is 16 MiB
        ),
        cost_estimate=cost,
    )(w, b2, xt)

    return out_t.T                 # back to (B, out_features)


def init_params(key, in_features=6, out_features=6):
    # Deterministic init mirroring torch.nn.Linear's default:
    # U(-1/sqrt(in_features), 1/sqrt(in_features)) for both weight and bias.
    kw, kb = jax.random.split(key)
    bound = 1.0 / jnp.sqrt(jnp.float32(in_features))
    w = jax.random.uniform(kw, (out_features, in_features), jnp.float32, -bound, bound)
    b = jax.random.uniform(kb, (out_features,), jnp.float32, -bound, bound)
    return w, b


if __name__ == "__main__":
    key = jax.random.PRNGKey(0)
    k_param, k1, k2, k3 = jax.random.split(key, 4)

    num_statistics = 6
    out_features = 6
    w, b = init_params(k_param, num_statistics, out_features)

    def reference(xv):
        return xv @ w.T + b[None, :]

    # 1) Tiny batch (the module's typical use): dispatched to plain XLA.
    x_tiny = jax.random.normal(k1, (2, num_statistics), jnp.float32)
    out_tiny = statistics_module_forward(x_tiny, w, b)
    jax.block_until_ready(out_tiny)
    assert out_tiny.shape == (2, out_features)
    assert jnp.allclose(out_tiny, reference(x_tiny), atol=1e-5, rtol=1e-5)

    # 2) Pallas lane-dense path, single tile (forced via threshold=0).
    x_small = jax.random.normal(k2, (512, num_statistics), jnp.float32)
    out_small = statistics_module_forward(x_small, w, b, xla_batch_threshold=0)
    jax.block_until_ready(out_small)
    assert out_small.shape == (512, out_features)
    assert jnp.allclose(out_small, reference(x_small), atol=1e-5, rtol=1e-5)

    # 3) Pallas path with multiple tiles and a ragged last tile.
    x_ragged = jax.random.normal(k3, (1000, num_statistics), jnp.float32)
    out_ragged = statistics_module_forward(x_ragged, w, b, xla_batch_threshold=0)
    jax.block_until_ready(out_ragged)
    assert out_ragged.shape == (1000, out_features)
    assert jnp.allclose(out_ragged, reference(x_ragged), atol=1e-5, rtol=1e-5)

    print("KERNEL_OK")
</pallas_src>

<mosaic_0001>
module attributes {stable_mosaic.version = 11 : i64} {
  func.func @_linear_t_kernel(%arg0: i32, %arg1: memref<6x6xf32, #tpu.memory_space<vmem>>, %arg2: memref<6x1xf32, #tpu.memory_space<vmem>>, %arg3: memref<6x512xf32, #tpu.memory_space<vmem>>, %arg4: memref<6x512xf32, #tpu.memory_space<vmem>>) attributes {dimension_semantics = [#tpu.dimension_semantics<parallel>], iteration_bounds = array<i64: 1>, scalar_prefetch = 0 : i64, scratch_operands = 0 : i64, tpu.core_type = #tpu.core_type<tc>, window_params = [{pipeline_mode = #tpu.pipeline_mode<synchronous>, transform_indices = @transform_0, window_bounds = array<i64: 6, 6>}, {pipeline_mode = #tpu.pipeline_mode<synchronous>, transform_indices = @transform_1, window_bounds = array<i64: 6, 1>}, {transform_indices = @transform_2, window_bounds = array<i64: 6, 512>}, {transform_indices = @transform_3, window_bounds = array<i64: 6, 512>}]} {
    %c0 = arith.constant 0 : index
    %c0_0 = arith.constant 0 : index
    %0 = vector.load %arg1[%c0, %c0_0] : memref<6x6xf32, #tpu.memory_space<vmem>>, vector<6x6xf32>
    %c0_1 = arith.constant 0 : index
    %c0_2 = arith.constant 0 : index
    %1 = vector.load %arg3[%c0_1, %c0_2] : memref<6x512xf32, #tpu.memory_space<vmem>>, vector<6x512xf32>
    %cst = arith.constant dense<0.000000e+00> : vector<6x512xf32>
    %2 = tpu.matmul %0, %1, %cst {dimension_numbers = #tpu.dot_dimension_numbers<[1], [0], [0], [1], [0, 0, 1, 1], [], []>} : vector<6x6xf32>, vector<6x512xf32>, vector<6x512xf32> -> vector<6x512xf32>
    %c0_3 = arith.constant 0 : index
    %c0_4 = arith.constant 0 : index
    %3 = vector.load %arg2[%c0_3, %c0_4] : memref<6x1xf32, #tpu.memory_space<vmem>>, vector<6x1xf32>
    %4 = vector.broadcast %3 : vector<6x1xf32> to vector<6x512xf32>
    %5 = arith.addf %2, %4 : vector<6x512xf32>
    %c0_5 = arith.constant 0 : index
    %c0_6 = arith.constant 0 : index
    %6 = vector.load %arg4[%c0_5, %c0_6] : memref<6x512xf32, #tpu.memory_space<vmem>>, vector<6x512xf32>
    tpu.vector_store %arg4[%c0_5, %c0_6], %5 {strides = array<i32>} : memref<6x512xf32, #tpu.memory_space<vmem>>, vector<6x512xf32>,
    return
  }
  func.func @transform_0(%arg0: i32) -> (i32, i32) {
    %c0_i32 = arith.constant 0 : i32
    %c0_i32_0 = arith.constant 0 : i32
    %c0_i32_1 = arith.constant 0 : i32
    return %c0_i32, %c0_i32_0 : i32, i32
  }
  func.func @transform_1(%arg0: i32) -> (i32, i32) {
    %c0_i32 = arith.constant 0 : i32
    %c0_i32_0 = arith.constant 0 : i32
    %c0_i32_1 = arith.constant 0 : i32
    return %c0_i32, %c0_i32_0 : i32, i32
  }
  func.func @transform_2(%arg0: i32) -> (i32, i32) {
    %c0_i32 = arith.constant 0 : i32
    %c0_i32_0 = arith.constant 0 : i32
    return %c0_i32, %arg0 : i32, i32
  }
  func.func @transform_3(%arg0: i32) -> (i32, i32) {
    %c0_i32 = arith.constant 0 : i32
    %c0_i32_0 = arith.constant 0 : i32
    return %c0_i32, %arg0 : i32, i32
  }
}

</mosaic_0001>

<llo_original>
// kernel: tpu_custom_call.1
$region0: #{tpu_custom_call.1}
  #allocation0 [shape = 'u32[]', space=smem, size = 0x4, offset = 0x4, fixed_abs, tag = 'smem constant byte address 0x4 - core index']
  #allocation1 [shape = 'u32[144,128]{1,0:T(1,128)}', space=vmem, size = 0x12000, scoped, tag = 'internal scratch']
  %s0 = inlined_call_operand.vmem [shape: f32[6,6], index: 0, kind: input, shape index: {}]
  %s1 = inlined_call_operand.vmem [shape: f32[6,1], index: 1, kind: input, shape index: {}]
  %s2 = inlined_call_operand.hbm [shape: f32[6,512], index: 2, kind: input, shape index: {}]
  %s3 = inlined_call_operand.hbm [shape: f32[6,512], index: 3, kind: output, shape index: {}]
  %s4 = sld [smem:[#allocation0]]
  $region26: #{tpu_custom_call.1} parent=0
    _
  %s6 = ssub.s32 1, %s4
  %s7 = scalar_select 0, %s6, %s4
  $region1: #{tpu_custom_call.1} parent=0
    #allocation2 [shape = 'u8[16384]{0}', space=vmem, size = 0x4000, scoped, tag = 'input window, operand 2, single buffered']
    #allocation3 [shape = 's32[1]{0}', space=sflag, size = 0x4, scoped, tag = 'scoped memory for tpu_custom_call.1']
    #allocation4 [shape = 's32[1]{0}', space=sflag, size = 0x4, scoped, tag = 'scoped memory for tpu_custom_call.1']
    #allocation5 [shape = 'u8[16384]{0}', space=vmem, size = 0x4000, scoped, tag = 'output window, operand 0, single buffered']
    %8 = vsyncpa [#allocation3], 0
    %9 = vsyncpa [#allocation4], 0
    // Predicated region
    $region2: #{tpu_custom_call.1} parent=1 // pred_check
      _
    $region3: #{tpu_custom_call.1} parent=1 // pred_check_branch
      %11 = sbr.rel (0) target = $region5
    $region4: #{tpu_custom_call.1} parent=1 // pred_region
      _
    $region5: #{tpu_custom_call.1} parent=1 // pred_fallthru
      _
    // Predicated region
    $region6: #{tpu_custom_call.1} parent=1 // pred_check
      _
    $region7: #{tpu_custom_call.1} parent=1 // pred_check_branch
      %13 = sbr.rel (0) target = $region9
    $region8: #{tpu_custom_call.1} parent=1 // pred_region
      _
    $region9: #{tpu_custom_call.1} parent=1 // pred_fallthru
      _
    // Predicated region
    $region10: #{tpu_custom_call.1} parent=1 // pred_check
      _
    $region11: #{tpu_custom_call.1} parent=1 // pred_check_branch
      %15 = sbr.rel (0) target = $region13
    $region12: #{tpu_custom_call.1} parent=1 // pred_region
      %s17 = ssub.s32 512, 512
      %18 = vsyncadd [#allocation3], %s17
      %s20 = sshll.u32 [#allocation2], 4
      %s21 = int_to_ptr.vmem [resolvable:$true] %s20
      %23 = dma.hbm_to_vmem [thread:$0]  %s2, 512, %s21, [#allocation3]
    $region13: #{tpu_custom_call.1} parent=1 // pred_fallthru
      _
    // Predicated region
    $region14: #{tpu_custom_call.1} parent=1 // pred_check
      _
    $region15: #{tpu_custom_call.1} parent=1 // pred_check_branch
      %25 = sbr.rel (0) target = $region17
    $region16: #{tpu_custom_call.1} parent=1 // pred_region
      %26 = dma.done [#allocation3], 512
    $region17: #{tpu_custom_call.1} parent=1 // pred_fallthru
      _
    %v27 = vld [vmem:[%s0] sm:$0x3f]
    %v28 = vld [vmem:[#allocation2] sm:$0x3f]
    %v29 = vld [vmem:[#allocation2 + $0x8] sm:$0x3f]
    %v30 = vld [vmem:[#allocation2 + $0x10] sm:$0x3f]
    %v31 = vld [vmem:[#allocation2 + $0x18] sm:$0x3f]
    %v32 = vld [vmem:[%s1] sm:$0x3f]
    %34 = vset.pattern.permute.xlu0 0
    %35 = vperm.xlu0 %34, %v32
    %v36 = vpop.permute.xlu0 %35
    %vm38 = vcmask 48128
    %v40 = vsel %vm38, %v27, 0
    %vm42 = vcmask 1045504
    %v44 = vsel %vm42, %v28, 0
    %v47 = vsel %vm42, %v29, 0
    %v50 = vsel %vm42, %v30, 0
    %v53 = vsel %vm42, %v31, 0
    %55 = vmatprep.subr.mxu0 0.0
    %56 = vmatpush1.msra.mxu0 0.0
    %57 = vmatprep.subr.mxu0 0.0
    %58 = vmatpush1.msra.mxu0 0.0
    %59 = vmatprep.subr.mxu0 0.0
    %60 = vmatpush1.msra.mxu0 0.0
    %61 = vmatprep.subr.mxu0 0.0
    %62 = vmatpush1.msra.mxu0 0.0
    %63 = vmatprep.subr.mxu0 0.0
    %64 = vmatpush1.msra.mxu0 0.0
    %65 = vmatprep.subr.mxu0 0.0
    %66 = vmatpush1.msra.mxu0 0.0
    %67 = vmatprep.subr.mxu0 0.0
    %68 = vmatpush1.msra.mxu0 0.0
    %69 = vmatprep.subr.mxu0 0.0
    %70 = vmatpush1.msra.mxu0 0.0
    %71 = vmatprep.subr.mxu0 0.0
    %72 = vmatpush1.msra.mxu0 0.0
    %73 = vmatprep.subr.mxu0 0.0
    %74 = vmatpush1.msra.mxu0 0.0
    %75 = vmatprep.subr.mxu0 0.0
    %76 = vmatpush1.msra.mxu0 0.0
    %77 = vmatprep.subr.mxu0 0.0
    %78 = vmatpush1.msra.mxu0 0.0
    %79 = vmatprep.subr.mxu0 0.0
    %80 = vmatpush1.msra.mxu0 0.0
    %81 = vmatprep.subr.mxu0 0.0
    %82 = vmatpush1.msra.mxu0 0.0
    %83 = vmatprep.subr.mxu0 0.0
    %84 = vmatpush1.msra.mxu0 0.0
    %85 = vmatprep.subr.mxu0 %v47
    %86 = vmatpush1.msra.mxu0 %v44
    %87 = vmatprep.subr.mxu0 0.0
    %88 = vmatpush2.msra.mxu0 0.0
    %89 = vmatprep.subr.mxu0 0.0
    %90 = vmatpush2.msra.mxu0 0.0
    %91 = vmatprep.subr.mxu0 0.0
    %92 = vmatpush2.msra.mxu0 0.0
    %93 = vmatprep.subr.mxu0 0.0
    %94 = vmatpush2.msra.mxu0 0.0
    %95 = vmatprep.subr.mxu0 0.0
    %96 = vmatpush2.msra.mxu0 0.0
    %97 = vmatprep.subr.mxu0 0.0
    %98 = vmatpush2.msra.mxu0 0.0
    %99 = vmatprep.subr.mxu0 0.0
    %100 = vmatpush2.msra.mxu0 0.0
    %101 = vmatprep.subr.mxu0 0.0
    %102 = vmatpush2.msra.mxu0 0.0
    %103 = vmatprep.subr.mxu0 0.0
    %104 = vmatpush2.msra.mxu0 0.0
    %105 = vmatprep.subr.mxu0 0.0
    %106 = vmatpush2.msra.mxu0 0.0
    %107 = vmatprep.subr.mxu0 0.0
    %108 = vmatpush2.msra.mxu0 0.0
    %109 = vmatprep.subr.mxu0 0.0
    %110 = vmatpush2.msra.mxu0 0.0
    %111 = vmatprep.subr.mxu0 0.0
    %112 = vmatpush2.msra.mxu0 0.0
    %113 = vmatprep.subr.mxu0 0.0
    %114 = vmatpush2.msra.mxu0 0.0
    %115 = vmatprep.subr.mxu0 0.0
    %116 = vmatpush2.msra.mxu0 0.0
    %117 = vmatprep.subr.mxu0 0.0
    %118 = vmatpush2.msra.mxu0 0.0
    %119 = vmatprep.mubr.f32.mxu0 0.0
    %120 = vmatmul.mubr.f32.gmra.mxu0 %v40
    %v121 = vpop.f32.mrf.mxu0
    %v122 = vadd.f32 %v36, %v121
    %v123 = vpop.f32.mrf.mxu0
    %v124 = vadd.f32 %v36, %v123
    %125 = vdwg.mxu0
    %126 = vmatprep.subr.mxu0 0.0
    %127 = vmatpush1.msra.mxu0 0.0
    %128 = vmatprep.subr.mxu0 0.0
    %129 = vmatpush1.msra.mxu0 0.0
    %130 = vmatprep.subr.mxu0 0.0
    %131 = vmatpush1.msra.mxu0 0.0
    %132 = vmatprep.subr.mxu0 0.0
    %133 = vmatpush1.msra.mxu0 0.0
    %134 = vmatprep.subr.mxu0 0.0
    %135 = vmatpush1.msra.mxu0 0.0
    %136 = vmatprep.subr.mxu0 0.0
    %137 = vmatpush1.msra.mxu0 0.0
    %138 = vmatprep.subr.mxu0 0.0
    %139 = vmatpush1.msra.mxu0 0.0
    %140 = vmatprep.subr.mxu0 0.0
    %141 = vmatpush1.msra.mxu0 0.0
    %142 = vmatprep.subr.mxu0 0.0
    %143 = vmatpush1.msra.mxu0 0.0
    %144 = vmatprep.subr.mxu0 0.0
    %145 = vmatpush1.msra.mxu0 0.0
    %146 = vmatprep.subr.mxu0 0.0
    %147 = vmatpush1.msra.mxu0 0.0
    %148 = vmatprep.subr.mxu0 0.0
    %149 = vmatpush1.msra.mxu0 0.0
    %150 = vmatprep.subr.mxu0 0.0
    %151 = vmatpush1.msra.mxu0 0.0
    %152 = vmatprep.subr.mxu0 0.0
    %153 = vmatpush1.msra.mxu0 0.0
    %154 = vmatprep.subr.mxu0 0.0
    %155 = vmatpush1.msra.mxu0 0.0
    %156 = vmatprep.subr.mxu0 %v53
    %157 = vmatpush1.msra.mxu0 %v50
    %158 = vmatprep.subr.mxu0 0.0
    %159 = vmatpush2.msra.mxu0 0.0
    %160 = vmatprep.subr.mxu0 0.0
    %161 = vmatpush2.msra.mxu0 0.0
    %162 = vmatprep.subr.mxu0 0.0
    %163 = vmatpush2.msra.mxu0 0.0
    %164 = vmatprep.subr.mxu0 0.0
    %165 = vmatpush2.msra.mxu0 0.0
    %166 = vmatprep.subr.mxu0 0.0
    %167 = vmatpush2.msra.mxu0 0.0
    %168 = vmatprep.subr.mxu0 0.0
    %169 = vmatpush2.msra.mxu0 0.0
    %170 = vmatprep.subr.mxu0 0.0
    %171 = vmatpush2.msra.mxu0 0.0
    %172 = vmatprep.subr.mxu0 0.0
    %173 = vmatpush2.msra.mxu0 0.0
    %174 = vmatprep.subr.mxu0 0.0
    %175 = vmatpush2.msra.mxu0 0.0
    %176 = vmatprep.subr.mxu0 0.0
    %177 = vmatpush2.msra.mxu0 0.0
    %178 = vmatprep.subr.mxu0 0.0
    %179 = vmatpush2.msra.mxu0 0.0
    %180 = vmatprep.subr.mxu0 0.0
    %181 = vmatpush2.msra.mxu0 0.0
    %182 = vmatprep.subr.mxu0 0.0
    %183 = vmatpush2.msra.mxu0 0.0
    %184 = vmatprep.subr.mxu0 0.0
    %185 = vmatpush2.msra.mxu0 0.0
    %186 = vmatprep.subr.mxu0 0.0
    %187 = vmatpush2.msra.mxu0 0.0
    %188 = vmatprep.subr.mxu0 0.0
    %189 = vmatpush2.msra.mxu0 0.0
    %190 = vmatprep.mubr.f32.mxu0 0.0
    %191 = vmatmul.mubr.f32.gmra.mxu0 %v40
    %v192 = vpop.f32.mrf.mxu0
    %v193 = vadd.f32 %v36, %v192
    %v194 = vpop.f32.mrf.mxu0
    %v195 = vadd.f32 %v36, %v194
    %196 = vdwg.mxu0
    %197 = vst [vmem:[#allocation5] sm:$0x3f] %v122
    %198 = vst [vmem:[#allocation5 + $0x8] sm:$0x3f] %v124
    %199 = vst [vmem:[#allocation5 + $0x10] sm:$0x3f] %v193
    %200 = vst [vmem:[#allocation5 + $0x18] sm:$0x3f] %v195
    // Predicated region
    $region18: #{tpu_custom_call.1} parent=1 // pred_check
      _
    $region19: #{tpu_custom_call.1} parent=1 // pred_check_branch
      %202 = sbr.rel (0) target = $region21
    $region20: #{tpu_custom_call.1} parent=1 // pred_region
      %s204 = ssub.s32 512, 512
      %205 = vsyncadd [#allocation4], %s204
      %s207 = sshll.u32 [#allocation5], 4
      %s208 = int_to_ptr.vmem [resolvable:$true] %s207
      %210 = dma.vmem_to_hbm [thread:$0]  %s208, 512, %s3, [#allocation4]
    $region21: #{tpu_custom_call.1} parent=1 // pred_fallthru
      _
    // Predicated region
    $region22: #{tpu_custom_call.1} parent=1 // pred_check
      _
    $region23: #{tpu_custom_call.1} parent=1 // pred_check_branch
      %212 = sbr.rel (0) target = $region25
    $region24: #{tpu_custom_call.1} parent=1 // pred_region
      %213 = dma.done [#allocation4], 512
    $region25: #{tpu_custom_call.1} parent=1 // pred_fallthru
      _
    %214 = vsyncpa [#allocation3], 1
    %215 = vsyncpa [#allocation4], 1

</llo_original>
